<compile_context>
chip_gen: v6e
topology: v6e:2x2x1
jax: 0.10.0
libtpu: 0.0.40
codegen_flags: <defaults>
</compile_context>

<pallas_src>
import jax
import jax.numpy as jnp
from jax.experimental import pallas as pl
from jax.experimental.pallas import tpu as pltpu

INPUT_LEN = 2
OUTPUT_LEN = 2
EMBED_LEN = 64
HIDDEN_LEN = 64
CELL_LEN = 64

# Row layout of the packed small-parameter array (8, 4*CELL_LEN):
_ROW_WE0, _ROW_WE1, _ROW_BE, _ROW_BG, _ROW_BD, _ROW_WD0, _ROW_WD1 = 0, 1, 2, 3, 4, 5, 6
_SLAB_LEN = 2 * HIDDEN_LEN + OUTPUT_LEN          # [h1 | c1 | out] per step


def vlstm_seq_kernel(x_ref, hc0_ref, pack_ref, wg_ref, slab_ref, hc_scr):
    """One grid step = one LSTM timestep for one group of B sequences.

    x_ref   : (T, B, INPUT_LEN) f32  whole per-group input, fetched once per group
    hc0_ref : (B, 2*HIDDEN)     f32  initial [h0 | c0] for this group
    pack_ref: (8, 4*CELL)       f32  packed small params (embed W/b, gate bias, wd^T, bd)
    wg_ref  : (128, 4*CELL)     bf16 fused [W_ih; W_hh], grid-invariant (VMEM resident)
    slab_ref: (B, 2*HIDDEN+OUT) f32  per-step output slab [h1 | c1 | out]
    hc_scr  : (B, 2*HIDDEN)     f32  VMEM scratch carrying the recurrent state
    """
    t = pl.program_id(1)
    H = CELL_LEN

    @pl.when(t == 0)
    def _():                                   # reset carried state per group
        hc_scr[...] = hc0_ref[...]

    # --- embedding Linear(2, 64) + tanh on the VPU ---------------------------
    x = x_ref[t]                                              # (B, 2)
    we0 = pack_ref[_ROW_WE0:_ROW_WE0 + 1, 0:EMBED_LEN]        # (1, 64)
    we1 = pack_ref[_ROW_WE1:_ROW_WE1 + 1, 0:EMBED_LEN]        # (1, 64)
    be = pack_ref[_ROW_BE:_ROW_BE + 1, 0:EMBED_LEN]           # (1, 64)
    emb = jnp.tanh(x[:, 0:1] * we0 + x[:, 1:2] * we1 + be)    # (B, 64) f32

    h0 = hc_scr[:, 0:HIDDEN_LEN]                              # (B, 64)
    c0 = hc_scr[:, HIDDEN_LEN:2 * HIDDEN_LEN]                 # (B, 64)

    # --- LSTMCell(64, 64): single fused bf16 MXU pass, f32 accumulation ------
    act = jnp.concatenate([emb, h0], axis=-1).astype(jnp.bfloat16)   # (B, 128)
    bg = pack_ref[_ROW_BG:_ROW_BG + 1, :]                             # (1, 256)
    gates = jnp.dot(act, wg_ref[...],
                    preferred_element_type=jnp.float32) + bg          # (B, 256)

    # PyTorch gate order: (i, f, g, o).
    i_g = jax.nn.sigmoid(gates[:, 0 * H:1 * H])
    f_g = jax.nn.sigmoid(gates[:, 1 * H:2 * H])
    g_g = jnp.tanh(gates[:, 2 * H:3 * H])
    o_g = jax.nn.sigmoid(gates[:, 3 * H:4 * H])
    c1 = f_g * c0 + i_g * g_g
    h1 = o_g * jnp.tanh(c1)

    hc_new = jnp.concatenate([h1, c1], axis=-1)               # (B, 128)
    hc_scr[...] = hc_new                                      # carry to next step
    slab_ref[:, 0:2 * H] = hc_new                             # lane-dense 128-wide store

    # --- decoding Linear(64, 2) + tanh on the VPU/XLU (N=2 would waste MXU) --
    wd0 = pack_ref[_ROW_WD0:_ROW_WD0 + 1, 0:HIDDEN_LEN]       # (1, 64) = wd[:, 0]
    wd1 = pack_ref[_ROW_WD1:_ROW_WD1 + 1, 0:HIDDEN_LEN]       # (1, 64) = wd[:, 1]
    bd = pack_ref[_ROW_BD:_ROW_BD + 1, 0:OUTPUT_LEN]          # (1, 2)
    o0 = jnp.sum(h1 * wd0, axis=-1, keepdims=True)            # (B, 1)
    o1 = jnp.sum(h1 * wd1, axis=-1, keepdims=True)            # (B, 1)
    out = jnp.tanh(jnp.concatenate([o0, o1], axis=-1) + bd)   # (B, 2)
    slab_ref[:, 2 * H:2 * H + OUTPUT_LEN] = out


def make_params(key):
    """Deterministic uniform init (roughly matching PyTorch default ranges)."""
    ks = jax.random.split(key, 8)
    u = lambda k, shape, bound: jax.random.uniform(
        k, shape, jnp.float32, minval=-bound, maxval=bound)
    e_b = 1.0 / float(INPUT_LEN) ** 0.5
    l_b = 1.0 / float(CELL_LEN) ** 0.5
    d_b = 1.0 / float(HIDDEN_LEN) ** 0.5
    return dict(
        we=u(ks[0], (INPUT_LEN, EMBED_LEN), e_b),          # embed weight (in, out)
        be=u(ks[1], (EMBED_LEN,), e_b),                    # embed bias
        wih=u(ks[2], (EMBED_LEN, 4 * CELL_LEN), l_b),      # LSTM input->gates (in, out)
        whh=u(ks[3], (CELL_LEN, 4 * CELL_LEN), l_b),       # LSTM hidden->gates (in, out)
        bg=u(ks[4], (4 * CELL_LEN,), l_b)                  # b_ih + b_hh combined
           + u(ks[5], (4 * CELL_LEN,), l_b),
        wd=u(ks[6], (HIDDEN_LEN, OUTPUT_LEN), d_b),        # decode weight (in, out)
        bd=u(ks[7], (OUTPUT_LEN,), d_b),                   # decode bias
    )


def pack_params(p):
    """One-time packing (hoisted out of the per-step / per-call path)."""
    pack = jnp.zeros((8, 4 * CELL_LEN), jnp.float32)
    pack = pack.at[_ROW_WE0, 0:EMBED_LEN].set(p["we"][0])
    pack = pack.at[_ROW_WE1, 0:EMBED_LEN].set(p["we"][1])
    pack = pack.at[_ROW_BE, 0:EMBED_LEN].set(p["be"])
    pack = pack.at[_ROW_BG, :].set(p["bg"])
    pack = pack.at[_ROW_BD, 0:OUTPUT_LEN].set(p["bd"])
    pack = pack.at[_ROW_WD0, 0:HIDDEN_LEN].set(p["wd"][:, 0])
    pack = pack.at[_ROW_WD1, 0:HIDDEN_LEN].set(p["wd"][:, 1])
    wg = jnp.concatenate([p["wih"], p["whh"]], axis=0).astype(jnp.bfloat16)
    return pack, wg


def vlstm_sequence(packed, x_seq, hc0):
    """Run the whole recurrence (G groups x T steps x B rows) in ONE pallas_call.

    x_seq: (G, T, B, INPUT_LEN) f32, hc0: (G, B, 2*HIDDEN) f32 stacked [h0|c0].
    Returns (out_seq (G,T,B,2), h_seq (G,T,B,64), c_seq (G,T,B,64)).
    """
    pack, wg = packed
    G, T, B, _ = x_seq.shape
    H2 = 2 * HIDDEN_LEN

    flops = int(G * T * 2 * B * ((EMBED_LEN + HIDDEN_LEN) * 4 * CELL_LEN
                                 + INPUT_LEN * EMBED_LEN
                                 + HIDDEN_LEN * OUTPUT_LEN))
    transcendentals = int(G * T * B * (EMBED_LEN + 4 * CELL_LEN + CELL_LEN + OUTPUT_LEN))
    bytes_accessed = int(wg.size * 2 + pack.size * 4 + x_seq.size * 4
                         + hc0.size * 4 + G * T * B * _SLAB_LEN * 4)

    slab = pl.pallas_call(
        vlstm_seq_kernel,
        out_shape=jax.ShapeDtypeStruct((G, T, B, _SLAB_LEN), jnp.float32),
        grid_spec=pltpu.PrefetchScalarGridSpec(
            num_scalar_prefetch=0,
            grid=(G, T),
            in_specs=[
                # Whole per-group input sequence: fetched once per group, resident over t.
                pl.BlockSpec((None, T, B, INPUT_LEN), lambda g, t: (g, 0, 0, 0)),
                # Initial state for the group: fetched once per group.
                pl.BlockSpec((None, B, H2), lambda g, t: (g, 0, 0)),
                # Packed small params + fused gate weights: grid-invariant (VMEM resident).
                pl.BlockSpec((8, 4 * CELL_LEN), lambda g, t: (0, 0)),
                pl.BlockSpec((EMBED_LEN + HIDDEN_LEN, 4 * CELL_LEN), lambda g, t: (0, 0)),
            ],
            out_specs=pl.BlockSpec((None, None, B, _SLAB_LEN), lambda g, t: (g, t, 0, 0)),
            scratch_shapes=[pltpu.VMEM((B, H2), jnp.float32)],
        ),
        compiler_params=pltpu.CompilerParams(
            dimension_semantics=("parallel", "arbitrary")),   # groups || , steps sequential
        cost_estimate=pl.CostEstimate(
            flops=flops, transcendentals=transcendentals, bytes_accessed=bytes_accessed),
    )(x_seq, hc0, pack, wg)

    out_seq = slab[..., H2:H2 + OUTPUT_LEN]
    h_seq = slab[..., 0:HIDDEN_LEN]
    c_seq = slab[..., HIDDEN_LEN:H2]
    return out_seq, h_seq, c_seq


def vlstm_forward(packed, node_pos, edges, edge_h, edge_c, h0, c0):
    """Original-module signature (one timestep, batch 1): thin compatibility
    wrapper over the sequence kernel with G=1, T=1, B=1. The fast path is
    vlstm_sequence(); use it whenever more than one step/sequence is needed."""
    x_seq = node_pos.reshape(1, 1, 1, INPUT_LEN).astype(jnp.float32)
    hc0 = jnp.concatenate(
        [h0.reshape(1, 1, HIDDEN_LEN), c0.reshape(1, 1, CELL_LEN)], axis=-1)
    out_seq, h_seq, c_seq = vlstm_sequence(packed, x_seq, hc0)
    out = out_seq[0, 0].reshape(1, OUTPUT_LEN)
    h1 = h_seq[0, 0].reshape(1, HIDDEN_LEN)
    c1 = c_seq[0, 0].reshape(1, CELL_LEN)
    # edges is unused; edgeRNN states pass straight through (same as PyTorch).
    return out, edge_h, edge_c, h1, c1


def vlstm_step_reference(params, x, h, c):
    """Single VLSTM step in plain JAX, mirroring the kernel's bf16 gate matmul."""
    emb = jnp.tanh(x @ params["we"] + params["be"])
    act = jnp.concatenate([emb, h], axis=-1).astype(jnp.bfloat16)
    wg = jnp.concatenate([params["wih"], params["whh"]], axis=0).astype(jnp.bfloat16)
    gates = jnp.dot(act, wg, preferred_element_type=jnp.float32) + params["bg"]
    H = CELL_LEN
    i = jax.nn.sigmoid(gates[..., 0 * H:1 * H])
    f = jax.nn.sigmoid(gates[..., 1 * H:2 * H])
    g = jnp.tanh(gates[..., 2 * H:3 * H])
    o = jax.nn.sigmoid(gates[..., 3 * H:4 * H])
    c1 = f * c + i * g
    h1 = o * jnp.tanh(c1)
    out = jnp.tanh(h1 @ params["wd"] + params["bd"])
    return out, h1, c1


def vlstm_seq_reference(params, x_seq, h0, c0):
    outs, hs, cs = [], [], []
    h, c = h0, c0
    for t in range(x_seq.shape[1]):
        out, h, c = vlstm_step_reference(params, x_seq[:, t], h, c)
        outs.append(out); hs.append(h); cs.append(c)
    return jnp.stack(outs, axis=1), jnp.stack(hs, axis=1), jnp.stack(cs, axis=1)


if __name__ == "__main__":
    key = jax.random.PRNGKey(0)
    (k_param, k_x, k_h, k_c, k_pos, k_edges,
     k_eh, k_ec, k_h1, k_c1) = jax.random.split(key, 10)

    params = make_params(k_param)
    packed = pack_params(params)          # hoisted: packed once, reused for every call

    # --- fast path: G=2 parallel groups x T=8 timesteps x B=8 batched rows ---
    G, T, B = 2, 8, 8
    x_seq = jax.random.normal(k_x, (G, T, B, INPUT_LEN), jnp.float32)
    h0 = jax.random.normal(k_h, (G, B, HIDDEN_LEN), jnp.float32)
    c0 = jax.random.normal(k_c, (G, B, CELL_LEN), jnp.float32)
    hc0 = jnp.concatenate([h0, c0], axis=-1)    # stacked [h|c] kept end-to-end

    seq_fn = jax.jit(vlstm_sequence)
    out_seq, h_seq, c_seq = seq_fn(packed, x_seq, hc0)
    jax.block_until_ready((out_seq, h_seq, c_seq))

    r_out, r_h, r_c = vlstm_seq_reference(params, x_seq, h0, c0)
    assert out_seq.shape == (G, T, B, OUTPUT_LEN)
    assert h_seq.shape == (G, T, B, HIDDEN_LEN) and c_seq.shape == (G, T, B, CELL_LEN)
    assert jnp.allclose(out_seq, r_out, atol=5e-3), float(jnp.max(jnp.abs(out_seq - r_out)))
    assert jnp.allclose(h_seq, r_h, atol=5e-3), float(jnp.max(jnp.abs(h_seq - r_h)))
    assert jnp.allclose(c_seq, r_c, atol=5e-3), float(jnp.max(jnp.abs(c_seq - r_c)))

    # --- original-module single-step signature (batch 1, compatibility path) ---
    node_pos = jax.random.normal(k_pos, (1, INPUT_LEN), jnp.float32)
    edges = jax.random.normal(k_edges, (1, INPUT_LEN), jnp.float32)       # unused
    edge_h = jax.random.normal(k_eh, (3, HIDDEN_LEN), jnp.float32)        # pass-through
    edge_c = jax.random.normal(k_ec, (3, CELL_LEN), jnp.float32)          # pass-through
    h0s = jax.random.normal(k_h1, (1, HIDDEN_LEN), jnp.float32)
    c0s = jax.random.normal(k_c1, (1, CELL_LEN), jnp.float32)

    out, eh, ec, h1, c1 = vlstm_forward(packed, node_pos, edges, edge_h, edge_c, h0s, c0s)
    jax.block_until_ready((out, eh, ec, h1, c1))
    r_out1, r_h1, r_c1 = vlstm_step_reference(params, node_pos, h0s, c0s)
    assert out.shape == (1, OUTPUT_LEN)
    assert jnp.allclose(out, r_out1, atol=2e-3), float(jnp.max(jnp.abs(out - r_out1)))
    assert jnp.allclose(h1, r_h1, atol=2e-3), float(jnp.max(jnp.abs(h1 - r_h1)))
    assert jnp.allclose(c1, r_c1, atol=2e-3), float(jnp.max(jnp.abs(c1 - r_c1)))
    assert jnp.allclose(eh, edge_h) and jnp.allclose(ec, edge_c)

    print("KERNEL_OK")
</pallas_src>

<mosaic_0001>
module attributes {stable_mosaic.version = 11 : i64} {
  func.func @vlstm_seq_kernel(%arg0: i32, %arg1: i32, %arg2: memref<1x8x8x2xf32, #tpu.memory_space<vmem>>, %arg3: memref<1x8x128xf32, #tpu.memory_space<vmem>>, %arg4: memref<8x256xf32, #tpu.memory_space<vmem>>, %arg5: memref<128x256xbf16, #tpu.memory_space<vmem>>, %arg6: memref<1x1x8x130xf32, #tpu.memory_space<vmem>>, %arg7: memref<8x128xf32, #tpu.memory_space<vmem>>) attributes {dimension_semantics = [#tpu.dimension_semantics<parallel>, #tpu.dimension_semantics<arbitrary>], iteration_bounds = array<i64: 2, 8>, scalar_prefetch = 0 : i64, scratch_operands = 1 : i64, tpu.core_type = #tpu.core_type<tc>, window_params = [{transform_indices = @transform_0, window_bounds = array<i64: 1, 8, 8, 2>}, {transform_indices = @transform_1, window_bounds = array<i64: 1, 8, 128>}, {pipeline_mode = #tpu.pipeline_mode<synchronous>, transform_indices = @transform_2, window_bounds = array<i64: 8, 256>}, {pipeline_mode = #tpu.pipeline_mode<synchronous>, transform_indices = @transform_3, window_bounds = array<i64: 128, 256>}, {transform_indices = @transform_4, window_bounds = array<i64: 1, 1, 8, 130>}]} {
    %c0_i32 = arith.constant 0 : i32
    %0 = arith.cmpi eq, %arg1, %c0_i32 : i32
    %1 = arith.extui %0 : i1 to i32
    %c0_i32_0 = arith.constant 0 : i32
    %2 = arith.cmpi ne, %1, %c0_i32_0 : i32
    scf.if %2 {
      %c0_30 = arith.constant 0 : index
      %c0_31 = arith.constant 0 : index
      %c0_32 = arith.constant 0 : index
      %78 = vector.load %arg3[%c0_30, %c0_31, %c0_32] : memref<1x8x128xf32, #tpu.memory_space<vmem>>, vector<1x8x128xf32>
      %79 = vector.shape_cast %78 : vector<1x8x128xf32> to vector<8x128xf32>
      %c0_33 = arith.constant 0 : index
      %c0_34 = arith.constant 0 : index
      %80 = vector.load %arg7[%c0_33, %c0_34] : memref<8x128xf32, #tpu.memory_space<vmem>>, vector<8x128xf32>
      tpu.vector_store %arg7[%c0_33, %c0_34], %79 {strides = array<i32>} : memref<8x128xf32, #tpu.memory_space<vmem>>, vector<8x128xf32>,
    } else {
    }
    %c0 = arith.constant 0 : index
    %3 = arith.index_cast %arg1 : i32 to index
    %c0_1 = arith.constant 0 : index
    %c0_2 = arith.constant 0 : index
    %4 = vector.load %arg2[%c0, %3, %c0_1, %c0_2] : memref<1x8x8x2xf32, #tpu.memory_space<vmem>>, vector<1x1x8x2xf32>
    %5 = vector.shape_cast %4 : vector<1x1x8x2xf32> to vector<8x2xf32>
    %c0_3 = arith.constant 0 : index
    %c0_4 = arith.constant 0 : index
    %6 = vector.load %arg4[%c0_3, %c0_4] : memref<8x256xf32, #tpu.memory_space<vmem>>, vector<1x64xf32>
    %c1 = arith.constant 1 : index
    %c0_5 = arith.constant 0 : index
    %7 = vector.load %arg4[%c1, %c0_5] : memref<8x256xf32, #tpu.memory_space<vmem>>, vector<1x64xf32>
    %c2 = arith.constant 2 : index
    %c0_6 = arith.constant 0 : index
    %8 = vector.load %arg4[%c2, %c0_6] : memref<8x256xf32, #tpu.memory_space<vmem>>, vector<1x64xf32>
    %9 = vector.extract_strided_slice %5 {offsets = [0, 0], sizes = [8, 1], strides = [1, 1]} : vector<8x2xf32> to vector<8x1xf32>
    %10 = vector.broadcast %9 : vector<8x1xf32> to vector<8x64xf32>
    %11 = vector.broadcast %6 : vector<1x64xf32> to vector<8x64xf32>
    %12 = arith.mulf %10, %11 : vector<8x64xf32>
    %13 = vector.extract_strided_slice %5 {offsets = [0, 1], sizes = [8, 1], strides = [1, 1]} : vector<8x2xf32> to vector<8x1xf32>
    %14 = vector.broadcast %13 : vector<8x1xf32> to vector<8x64xf32>
    %15 = vector.broadcast %7 : vector<1x64xf32> to vector<8x64xf32>
    %16 = arith.mulf %14, %15 : vector<8x64xf32>
    %17 = arith.addf %12, %16 : vector<8x64xf32>
    %18 = vector.broadcast %8 : vector<1x64xf32> to vector<8x64xf32>
    %19 = arith.addf %17, %18 : vector<8x64xf32>
    %20 = math.tanh %19 : vector<8x64xf32>
    %c0_7 = arith.constant 0 : index
    %c0_8 = arith.constant 0 : index
    %21 = vector.load %arg7[%c0_7, %c0_8] : memref<8x128xf32, #tpu.memory_space<vmem>>, vector<8x64xf32>
    %c0_9 = arith.constant 0 : index
    %c64 = arith.constant 64 : index
    %22 = vector.load %arg7[%c0_9, %c64] : memref<8x128xf32, #tpu.memory_space<vmem>>, vector<8x64xf32>
    %23 = tpu.concatenate %20, %21 in 1 : vector<8x64xf32>, vector<8x64xf32> -> vector<8x128xf32>
    %24 = arith.truncf %23 : vector<8x128xf32> to vector<8x128xbf16>
    %c3 = arith.constant 3 : index
    %c0_10 = arith.constant 0 : index
    %25 = vector.load %arg4[%c3, %c0_10] : memref<8x256xf32, #tpu.memory_space<vmem>>, vector<1x256xf32>
    %c0_11 = arith.constant 0 : index
    %c0_12 = arith.constant 0 : index
    %26 = vector.load %arg5[%c0_11, %c0_12] : memref<128x256xbf16, #tpu.memory_space<vmem>>, vector<128x256xbf16>
    %cst = arith.constant dense<0.000000e+00> : vector<8x256xf32>
    %27 = tpu.matmul %24, %26, %cst {dimension_numbers = #tpu.dot_dimension_numbers<[1], [0], [0], [1], [0, 0, 1, 1], [], []>} : vector<8x128xbf16>, vector<128x256xbf16>, vector<8x256xf32> -> vector<8x256xf32>
    %28 = vector.broadcast %25 : vector<1x256xf32> to vector<8x256xf32>
    %29 = arith.addf %27, %28 : vector<8x256xf32>
    %30 = vector.extract_strided_slice %29 {offsets = [0, 0], sizes = [8, 64], strides = [1, 1]} : vector<8x256xf32> to vector<8x64xf32>
    %31 = arith.negf %30 : vector<8x64xf32>
    %32 = math.exp %31 : vector<8x64xf32>
    %cst_13 = arith.constant 1.000000e+00 : f32
    %33 = vector.broadcast %cst_13 : f32 to vector<8x64xf32>
    %34 = arith.addf %33, %32 : vector<8x64xf32>
    %35 = arith.divf %33, %34 : vector<8x64xf32>
    %36 = vector.extract_strided_slice %29 {offsets = [0, 64], sizes = [8, 64], strides = [1, 1]} : vector<8x256xf32> to vector<8x64xf32>
    %37 = arith.negf %36 : vector<8x64xf32>
    %38 = math.exp %37 : vector<8x64xf32>
    %cst_14 = arith.constant 1.000000e+00 : f32
    %39 = vector.broadcast %cst_14 : f32 to vector<8x64xf32>
    %40 = arith.addf %39, %38 : vector<8x64xf32>
    %41 = arith.divf %39, %40 : vector<8x64xf32>
    %42 = vector.extract_strided_slice %29 {offsets = [0, 128], sizes = [8, 64], strides = [1, 1]} : vector<8x256xf32> to vector<8x64xf32>
    %43 = math.tanh %42 : vector<8x64xf32>
    %44 = vector.extract_strided_slice %29 {offsets = [0, 192], sizes = [8, 64], strides = [1, 1]} : vector<8x256xf32> to vector<8x64xf32>
    %45 = arith.negf %44 : vector<8x64xf32>
    %46 = math.exp %45 : vector<8x64xf32>
    %cst_15 = arith.constant 1.000000e+00 : f32
    %47 = vector.broadcast %cst_15 : f32 to vector<8x64xf32>
    %48 = arith.addf %47, %46 : vector<8x64xf32>
    %49 = arith.divf %47, %48 : vector<8x64xf32>
    %50 = arith.mulf %41, %22 : vector<8x64xf32>
    %51 = arith.mulf %35, %43 : vector<8x64xf32>
    %52 = arith.addf %50, %51 : vector<8x64xf32>
    %53 = math.tanh %52 : vector<8x64xf32>
    %54 = arith.mulf %49, %53 : vector<8x64xf32>
    %55 = tpu.concatenate %54, %52 in 1 : vector<8x64xf32>, vector<8x64xf32> -> vector<8x128xf32>
    %c0_16 = arith.constant 0 : index
    %c0_17 = arith.constant 0 : index
    %56 = vector.load %arg7[%c0_16, %c0_17] : memref<8x128xf32, #tpu.memory_space<vmem>>, vector<8x128xf32>
    tpu.vector_store %arg7[%c0_16, %c0_17], %55 {strides = array<i32>} : memref<8x128xf32, #tpu.memory_space<vmem>>, vector<8x128xf32>,
    %c0_18 = arith.constant 0 : index
    %c0_19 = arith.constant 0 : index
    %c0_20 = arith.constant 0 : index
    %c0_21 = arith.constant 0 : index
    %57 = vector.load %arg6[%c0_18, %c0_19, %c0_20, %c0_21] : memref<1x1x8x130xf32, #tpu.memory_space<vmem>>, vector<1x1x8x128xf32>
    %58 = vector.shape_cast %57 : vector<1x1x8x128xf32> to vector<8x128xf32>
    %59 = vector.shape_cast %55 : vector<8x128xf32> to vector<1x1x8x128xf32>
    tpu.vector_store %arg6[%c0_18, %c0_19, %c0_20, %c0_21], %59 {strides = array<i32>} : memref<1x1x8x130xf32, #tpu.memory_space<vmem>>, vector<1x1x8x128xf32>,
    %c5 = arith.constant 5 : index
    %c0_22 = arith.constant 0 : index
    %60 = vector.load %arg4[%c5, %c0_22] : memref<8x256xf32, #tpu.memory_space<vmem>>, vector<1x64xf32>
    %c6 = arith.constant 6 : index
    %c0_23 = arith.constant 0 : index
    %61 = vector.load %arg4[%c6, %c0_23] : memref<8x256xf32, #tpu.memory_space<vmem>>, vector<1x64xf32>
    %c4 = arith.constant 4 : index
    %c0_24 = arith.constant 0 : index
    %62 = vector.load %arg4[%c4, %c0_24] : memref<8x256xf32, #tpu.memory_space<vmem>>, vector<1x2xf32>
    %63 = vector.broadcast %60 : vector<1x64xf32> to vector<8x64xf32>
    %64 = arith.mulf %54, %63 : vector<8x64xf32>
    %cst_25 = arith.constant dense<0.000000e+00> : vector<8xf32>
    %65 = vector.multi_reduction <add>, %64, %cst_25 [1] : vector<8x64xf32> to vector<8xf32>
    %66 = vector.shape_cast %65 : vector<8xf32> to vector<8x1xf32>
    %67 = vector.broadcast %61 : vector<1x64xf32> to vector<8x64xf32>
    %68 = arith.mulf %54, %67 : vector<8x64xf32>
    %cst_26 = arith.constant dense<0.000000e+00> : vector<8xf32>
    %69 = vector.multi_reduction <add>, %68, %cst_26 [1] : vector<8x64xf32> to vector<8xf32>
    %70 = vector.shape_cast %69 : vector<8xf32> to vector<8x1xf32>
    %71 = tpu.concatenate %66, %70 in 1 : vector<8x1xf32>, vector<8x1xf32> -> vector<8x2xf32>
    %72 = vector.broadcast %62 : vector<1x2xf32> to vector<8x2xf32>
    %73 = arith.addf %71, %72 : vector<8x2xf32>
    %74 = math.tanh %73 : vector<8x2xf32>
    %c0_27 = arith.constant 0 : index
    %c0_28 = arith.constant 0 : index
    %c0_29 = arith.constant 0 : index
    %c128 = arith.constant 128 : index
    %75 = vector.load %arg6[%c0_27, %c0_28, %c0_29, %c128] : memref<1x1x8x130xf32, #tpu.memory_space<vmem>>, vector<1x1x8x2xf32>
    %76 = vector.shape_cast %75 : vector<1x1x8x2xf32> to vector<8x2xf32>
    %77 = vector.shape_cast %74 : vector<8x2xf32> to vector<1x1x8x2xf32>
    tpu.vector_store %arg6[%c0_27, %c0_28, %c0_29, %c128], %77 {strides = array<i32>} : memref<1x1x8x130xf32, #tpu.memory_space<vmem>>, vector<1x1x8x2xf32>,
    return
  }
  func.func @transform_0(%arg0: i32, %arg1: i32) -> (i32, i32, i32, i32) {
    %c0_i32 = arith.constant 0 : i32
    %c0_i32_0 = arith.constant 0 : i32
    %c0_i32_1 = arith.constant 0 : i32
    %c0_i32_2 = arith.constant 0 : i32
    return %arg0, %c0_i32, %c0_i32_0, %c0_i32_1 : i32, i32, i32, i32
  }
  func.func @transform_1(%arg0: i32, %arg1: i32) -> (i32, i32, i32) {
    %c0_i32 = arith.constant 0 : i32
    %c0_i32_0 = arith.constant 0 : i32
    %c0_i32_1 = arith.constant 0 : i32
    return %arg0, %c0_i32, %c0_i32_0 : i32, i32, i32
  }
  func.func @transform_2(%arg0: i32, %arg1: i32) -> (i32, i32) {
    %c0_i32 = arith.constant 0 : i32
    %c0_i32_0 = arith.constant 0 : i32
    %c0_i32_1 = arith.constant 0 : i32
    return %c0_i32, %c0_i32_0 : i32, i32
  }
  func.func @transform_3(%arg0: i32, %arg1: i32) -> (i32, i32) {
    %c0_i32 = arith.constant 0 : i32
    %c0_i32_0 = arith.constant 0 : i32
    %c0_i32_1 = arith.constant 0 : i32
    return %c0_i32, %c0_i32_0 : i32, i32
  }
  func.func @transform_4(%arg0: i32, %arg1: i32) -> (i32, i32, i32, i32) {
    %c0_i32 = arith.constant 0 : i32
    %c0_i32_0 = arith.constant 0 : i32
    %c0_i32_1 = arith.constant 0 : i32
    return %arg0, %arg1, %c0_i32, %c0_i32_0 : i32, i32, i32, i32
  }
}

</mosaic_0001>

<llo_original>
// kernel: vlstm_sequence.1
$region0: #{vlstm_sequence.1}
  #allocation0 [shape = 'u32[]', space=smem, size = 0x4, offset = 0x4, fixed_abs, tag = 'smem constant byte address 0x4 - core index']
  #allocation1 [shape = 'u32[144,128]{1,0:T(1,128)}', space=vmem, size = 0x12000, scoped, tag = 'internal scratch']
  #allocation2 [shape = 'f32[8,128]{1,0:T(8,128)}', space=vmem, size = 0x1000, scoped, tag = 'scratch operand']
  %s0 = inlined_call_operand.vmem [shape: f32[2,8,8,2], index: 0, kind: input, shape index: {}]
  %s1 = inlined_call_operand.vmem [shape: f32[2,8,128], index: 1, kind: input, shape index: {}]
  %s2 = inlined_call_operand.vmem [shape: f32[8,256], index: 2, kind: input, shape index: {}]
  %s3 = inlined_call_operand.vmem [shape: bf16[128,256], index: 3, kind: input, shape index: {}]
  %s4 = inlined_call_operand.vmem [shape: f32[2,8,8,130], index: 4, kind: output, shape index: {}]
  %s5 = sld [smem:[#allocation0]]
  $region53: #{vlstm_sequence.1} parent=0
    _
  %s7 = ssub.s32 1, %s5
  %s8 = scalar_select 0, %s7, %s5
  loop: start=0, step=1, limit=18
  $region2: #{vlstm_sequence.1} parent=0 // loop_pre_header
    _
  $region3: #{vlstm_sequence.1} parent=0 // loop_header
    %s10 = sphi 0, %s14
    %p11 = scmp.ge.s32.totalorder %s10, 18
    %s17 = sphi 0, %s29
    %s18 = sphi 0, %s25
    %s19 = sphi 0, %s17
    %s20 = sphi 0, %s18
    %s21 = sphi 0, %s19
    %s22 = sphi 0, %s20
    %s32 = sphi 0, %s34
    %s35 = sphi 0, %s32
    %s36 = sphi 0, %s35
    %s52 = sphi 0, %s36
    %s58 = sphi 0, %s60
    %s61 = sphi 0, %s58
    %s62 = sphi 0, %s61
    %s78 = sphi 0, %s62
    %s82 = sphi 0, %s82
    %s84 = sphi 0, %s82
    %s85 = sphi 0, %s84
    %s99 = sphi 0, %s85
    %s103 = sphi 0, %s103
    %s105 = sphi 0, %s103
    %s106 = sphi 0, %s105
    %s120 = sphi 0, %s106
    %s128 = sphi 0, %s130
    %s131 = sphi 0, %s128
    %s132 = sphi 0, %s131
    %s148 = sphi 0, %s132
  $region4: #{vlstm_sequence.1} parent=0 // loop_header_branch
    %13 = sbr.rel (%p11) target = $region8
  $region5: #{vlstm_sequence.1} parent=0 // loop_body
    %s15 = ssub.s32 %s10, 1
    %s16 = ssub.s32 %s10, 2
    %s23 = sadd.s32 1, %s18
    %p24 = scmp.ge.s32.totalorder %s23, 8
    %s25 = scalar_select %p24, 0, %s23
    %s26 = sadd.s32 1, %s17
    %s27 = scalar_select %p24, %s26, %s17
    %p28 = scmp.ge.s32.totalorder %s27, 2
    %s29 = scalar_select %p28, 0, %s27
    %s30 = ssub.s32 %s17, %s29
    %p31 = scmp.eq.s32.totalorder %s30, 0
    %s33 = sadd.s32 %s32, 1
    %s34 = scalar_select %p31, %s32, %s33
    %p37 = pneg %p31
    %p38 = scmp.eq.s32.totalorder %s10, 15
    %p39 = por %p37, %p38
    %p40 = scmp.ne.s32.totalorder %s32, %s35
    %p41 = scmp.eq.s32.totalorder %s10, 0
    %p42 = por %p40, %p41
    %p43 = scmp.ne.s32.totalorder %s32, %s35
    %p44 = scmp.eq.s32.totalorder %s15, 15
    %p45 = por %p43, %p44
    %p46 = scmp.ne.s32.totalorder %s35, %s36
    %p47 = scmp.eq.s32.totalorder %s15, 0
    %p48 = por %p46, %p47
    %p49 = scmp.ne.s32.totalorder %s35, %s36
    %p50 = scmp.eq.s32.totalorder %s16, 15
    %p51 = por %p49, %p50
    %p53 = scmp.ne.s32.totalorder %s36, %s52
    %p54 = scmp.eq.s32.totalorder %s16, 0
    %p55 = por %p53, %p54
    %s56 = ssub.s32 %s17, %s29
    %p57 = scmp.eq.s32.totalorder %s56, 0
    %s59 = sadd.s32 %s58, 1
    %s60 = scalar_select %p57, %s58, %s59
    %p63 = pneg %p57
    %p64 = scmp.eq.s32.totalorder %s10, 15
    %p65 = por %p63, %p64
    %p66 = scmp.ne.s32.totalorder %s58, %s61
    %p67 = scmp.eq.s32.totalorder %s10, 0
    %p68 = por %p66, %p67
    %p69 = scmp.ne.s32.totalorder %s58, %s61
    %p70 = scmp.eq.s32.totalorder %s15, 15
    %p71 = por %p69, %p70
    %p72 = scmp.ne.s32.totalorder %s61, %s62
    %p73 = scmp.eq.s32.totalorder %s15, 0
    %p74 = por %p72, %p73
    %p75 = scmp.ne.s32.totalorder %s61, %s62
    %p76 = scmp.eq.s32.totalorder %s16, 15
    %p77 = por %p75, %p76
    %p79 = scmp.ne.s32.totalorder %s62, %s78
    %p80 = scmp.eq.s32.totalorder %s16, 0
    %p81 = por %p79, %p80
    %s83 = sadd.s32 %s82, 1
    %p86 = scmp.eq.s32.totalorder %s10, 15
    %p87 = scmp.ne.s32.totalorder %s82, %s84
    %p88 = scmp.eq.s32.totalorder %s10, 0
    %p89 = por %p87, %p88
    %p90 = scmp.ne.s32.totalorder %s82, %s84
    %p91 = scmp.eq.s32.totalorder %s15, 15
    %p92 = por %p90, %p91
    %p93 = scmp.ne.s32.totalorder %s84, %s85
    %p94 = scmp.eq.s32.totalorder %s15, 0
    %p95 = por %p93, %p94
    %p96 = scmp.ne.s32.totalorder %s84, %s85
    %p97 = scmp.eq.s32.totalorder %s16, 15
    %p98 = por %p96, %p97
    %p100 = scmp.ne.s32.totalorder %s85, %s99
    %p101 = scmp.eq.s32.totalorder %s16, 0
    %p102 = por %p100, %p101
    %s104 = sadd.s32 %s103, 1
    %p107 = scmp.eq.s32.totalorder %s10, 15
    %p108 = scmp.ne.s32.totalorder %s103, %s105
    %p109 = scmp.eq.s32.totalorder %s10, 0
    %p110 = por %p108, %p109
    %p111 = scmp.ne.s32.totalorder %s103, %s105
    %p112 = scmp.eq.s32.totalorder %s15, 15
    %p113 = por %p111, %p112
    %p114 = scmp.ne.s32.totalorder %s105, %s106
    %p115 = scmp.eq.s32.totalorder %s15, 0
    %p116 = por %p114, %p115
    %p117 = scmp.ne.s32.totalorder %s105, %s106
    %p118 = scmp.eq.s32.totalorder %s16, 15
    %p119 = por %p117, %p118
    %p121 = scmp.ne.s32.totalorder %s106, %s120
    %p122 = scmp.eq.s32.totalorder %s16, 0
    %p123 = por %p121, %p122
    %s124 = ssub.s32 %s17, %s29
    %s125 = ssub.s32 %s18, %s25
    %s126 = sor.u32 %s124, %s125
    %p127 = scmp.eq.s32.totalorder %s126, 0
    %s129 = sadd.s32 %s128, 1
    %s130 = scalar_select %p127, %s128, %s129
    %p133 = pneg %p127
    %p134 = scmp.eq.s32.totalorder %s10, 15
    %p135 = por %p133, %p134
    %p136 = scmp.ne.s32.totalorder %s128, %s131
    %p137 = scmp.eq.s32.totalorder %s10, 0
    %p138 = por %p136, %p137
    %p139 = scmp.ne.s32.totalorder %s128, %s131
    %p140 = scmp.eq.s32.totalorder %s15, 15
    %p141 = por %p139, %p140
    %p142 = scmp.ne.s32.totalorder %s131, %s132
    %p143 = scmp.eq.s32.totalorder %s15, 0
    %p144 = por %p142, %p143
    %p145 = scmp.ne.s32.totalorder %s131, %s132
    %p146 = scmp.eq.s32.totalorder %s16, 15
    %p147 = por %p145, %p146
    %p149 = scmp.ne.s32.totalorder %s132, %s148
    %p150 = scmp.eq.s32.totalorder %s16, 0
    %p151 = por %p149, %p150
    %p152 = scmp.le.s32.totalorder 1, %s10
    %p153 = scmp.lt.s32.totalorder %s10, 17
    %p154 = pnand %p152, %p153
    %p155 = pneg %p154
    // Predicated region
    $region9: #{vlstm_sequence.1} parent=5 // pred_check
      _
    $region10: #{vlstm_sequence.1} parent=5 // pred_check_branch
      %157 = sbr.rel (%p154) target = $region12
    $region11: #{vlstm_sequence.1} parent=5 // pred_region
      %s158 = ssub.s32 %s10, 1
      // Predicated region
      $region13: #{vlstm_sequence.1} parent=11 // pred_check
        %p159 = pneg %p95
      $region14: #{vlstm_sequence.1} parent=11 // pred_check_branch
        %161 = sbr.rel (%p159) target = $region16
      $region15: #{vlstm_sequence.1} parent=11 // pred_region
        _
      $region16: #{vlstm_sequence.1} parent=11 // pred_fallthru
        _
      // Predicated region
      $region17: #{vlstm_sequence.1} parent=11 // pred_check
        %p162 = pneg %p116
      $region18: #{vlstm_sequence.1} parent=11 // pred_check_branch
        %164 = sbr.rel (%p162) target = $region20
      $region19: #{vlstm_sequence.1} parent=11 // pred_region
        _
      $region20: #{vlstm_sequence.1} parent=11 // pred_fallthru
        _
    $region12: #{vlstm_sequence.1} parent=5 // pred_fallthru
      _
    %p165 = scmp.lt.s32.totalorder %s10, 16
    // Predicated region
    $region21: #{vlstm_sequence.1} parent=5 // pred_check
      %p166 = pneg %p165
    $region22: #{vlstm_sequence.1} parent=5 // pred_check_branch
      %168 = sbr.rel (%p166) target = $region24
    $region23: #{vlstm_sequence.1} parent=5 // pred_region
      // Predicated region
      $region25: #{vlstm_sequence.1} parent=23 // pred_check
        %p169 = pneg %p42
      $region26: #{vlstm_sequence.1} parent=23 // pred_check_branch
        %171 = sbr.rel (%p169) target = $region28
      $region27: #{vlstm_sequence.1} parent=23 // pred_region
        %p172 = scmp.lt.s32.totalorder %s17, 1
        %s173 = scalar_select %p172, %s17, 1
        %s174 = smul.addr %s173, 8
        %s175 = smul.addr %s174, 8
        %s176 = scalar_lea.vmem %s0, %s175
      $region28: #{vlstm_sequence.1} parent=23 // pred_fallthru
        _
      // Predicated region
      $region29: #{vlstm_sequence.1} parent=23 // pred_check
        %p177 = pneg %p68
      $region30: #{vlstm_sequence.1} parent=23 // pred_check_branch
        %179 = sbr.rel (%p177) target = $region32
      $region31: #{vlstm_sequence.1} parent=23 // pred_region
        %p180 = scmp.lt.s32.totalorder %s17, 1
        %s181 = scalar_select %p180, %s17, 1
        %s182 = smul.addr %s181, 8
        %s183 = scalar_lea.vmem %s1, %s182
      $region32: #{vlstm_sequence.1} parent=23 // pred_fallthru
        _
    $region24: #{vlstm_sequence.1} parent=5 // pred_fallthru
      _
    %p184 = scmp.le.s32.totalorder 1, %s10
    %p185 = scmp.lt.s32.totalorder %s10, 17
    %p186 = pnand %p184, %p185
    %p187 = pneg %p186
    // Predicated region
    $region33: #{vlstm_sequence.1} parent=5 // pred_check
      _
    $region34: #{vlstm_sequence.1} parent=5 // pred_check_branch
      %189 = sbr.rel (%p186) target = $region36
    $region35: #{vlstm_sequence.1} parent=5 // pred_region
      %s190 = ssub.s32 %s10, 1
      %p191 = scmp.lt.s32.totalorder %s19, 1
      %s192 = scalar_select %p191, %s19, 1
      %s193 = smul.addr %s192, 8
      %s194 = smul.addr %s193, 8
      %s195 = scalar_lea.vmem %s0, %s194
      %p196 = pneg %p48
      %p197 = pneg %p45
      %p198 = scmp.lt.s32.totalorder %s19, 1
      %s199 = scalar_select %p198, %s19, 1
      %s200 = smul.addr %s199, 8
      %s201 = scalar_lea.vmem %s1, %s200
      %p202 = pneg %p74
      %p203 = pneg %p71
      %p204 = pneg %p95
      %p205 = pneg %p92
      %p206 = pneg %p116
      %p207 = pneg %p113
      %p208 = pneg %p144
      %p209 = pneg %p141
      %p210 = scmp.lt.s32.totalorder %s19, 1
      %s211 = scalar_select %p210, %s19, 1
      %p212 = scmp.lt.s32.totalorder %s20, 7
      %s213 = scalar_select %p212, %s20, 7
      %s214 = smul.addr %s213, 2
      %s215 = smul.addr %s211, 16
      %s216 = sadd.s32 %s214, %s215
      %s217 = smul.addr %s216, 8
      %s218 = scalar_lea.vmem %s4, %s217
      %p219 = scmp.lt.s32.totalorder %s19, 1
      %s220 = scalar_select %p219, %s19, 1
      %s221 = smul.addr %s220, 8
      %s222 = smul.addr %s221, 8
      %s223 = scalar_lea.vmem %s0, %s222
      %p224 = scmp.lt.s32.totalorder %s19, 1
      %s225 = scalar_select %p224, %s19, 1
      %s226 = smul.addr %s225, 8
      %s227 = scalar_lea.vmem %s1, %s226
      %p228 = scmp.lt.s32.totalorder %s19, 1
      %s229 = scalar_select %p228, %s19, 1
      %p230 = scmp.lt.s32.totalorder %s20, 7
      %s231 = scalar_select %p230, %s20, 7
      %s232 = smul.addr %s231, 2
      %s233 = smul.addr %s229, 16
      %s234 = sadd.s32 %s232, %s233
      %s235 = smul.addr %s234, 8
      %s236 = scalar_lea.vmem %s4, %s235
      %p238 = scmp.eq.s32.totalorder %s20, 0
      // Predicated region
      $region37: #{vlstm_sequence.1} parent=35 // pred_check
        %p239 = pneg %p238
      $region38: #{vlstm_sequence.1} parent=35 // pred_check_branch
        %241 = sbr.rel (%p239) target = $region40
      $region39: #{vlstm_sequence.1} parent=35 // pred_region
        %v242 = vld [vmem:[%s227] sm:$0xff]
        %243 = vst [vmem:[#allocation2] sm:$0xff] %v242
      $region40: #{vlstm_sequence.1} parent=35 // pred_fallthru
        _
      %s244 = smul.u32 %s20, 8
      %s245 = scalar_lea.vmem %s223, %s244
      %v246 = vld [vmem:[%s245] sm:$0xff]
      %v247 = vld [vmem:[%s2] ss:$0 sm:$0xff]
      %v248 = vld [vmem:[%s2 + $0x1] ss:$0 sm:$0xff]
      %v249 = vld [vmem:[%s2 + $0x2] ss:$0 sm:$0xff]
      %251 = vset.pattern.permute.xlu0 0
      %252 = vperm.xlu0 %251, %v246
      %v253 = vpop.permute.xlu0 %252
      %v255 = vmul.f32 %v253, %v247
      %256 = vset.pattern.permute.xlu0 1
      %257 = vperm.xlu0 %256, %v246
      %v258 = vpop.permute.xlu0 %257
      %v260 = vmul.f32 %v258, %v248
      %v261 = vadd.f32 %v255, %v260
      %v262 = vadd.f32 %v261, %v249
      %v263 = vtanh.pop %v262
      %v264 = vld [vmem:[#allocation2] sm:$0xff]
      %266 = vrot.lane.b32.xlu0 %v264, 64
      %v267 = vpop.permute.xlu0 %266
      %vm269 = vcmask 523264
      %v270 = vsel %vm269, %v263, %v267
      %v271 = vpack.c.bf16 %v270, %v270
      %s272 = scalar_lea.vmem %s2, 3
      %v273 = vld [vmem:[%s272] ss:$8 sm:$0x3]
      %v274 = vld [vmem:[%s3] sm:$0xff]
      %v275 = vld [vmem:[%s3 + $0x8] sm:$0xff]
      %v276 = vld [vmem:[%s3 + $0x10] sm:$0xff]
      %v277 = vld [vmem:[%s3 + $0x18] sm:$0xff]
      %v278 = vld [vmem:[%s3 + $0x20] sm:$0xff]
      %v279 = vld [vmem:[%s3 + $0x28] sm:$0xff]
      %v280 = vld [vmem:[%s3 + $0x30] sm:$0xff]
      %v281 = vld [vmem:[%s3 + $0x38] sm:$0xff]
      %v282 = vld [vmem:[%s3 + $0x40] sm:$0xff]
      %v283 = vld [vmem:[%s3 + $0x48] sm:$0xff]
      %v284 = vld [vmem:[%s3 + $0x50] sm:$0xff]
      %v285 = vld [vmem:[%s3 + $0x58] sm:$0xff]
      %v286 = vld [vmem:[%s3 + $0x60] sm:$0xff]
      %v287 = vld [vmem:[%s3 + $0x68] sm:$0xff]
      %v288 = vld [vmem:[%s3 + $0x70] sm:$0xff]
      %v289 = vld [vmem:[%s3 + $0x78] sm:$0xff]
      %v291 = vlaneseq
      %v292 = vshrl.u32 %v291, 7
      %v293 = vsub.s32 0, %v292
      %v294 = vrot.slane %v273, %v293
      %v295 = vlaneseq
      %v296 = vshrl.u32 %v295, 7
      %v297 = vsub.s32 1, %v296
      %v298 = vrot.slane %v273, %v297
      %v317 = vunpack.c.l.b16 %v274
      %v318 = vunpack.c.h.b16 %v274
      %v319 = vunpack.c.l.b16 %v275
      %v320 = vunpack.c.h.b16 %v275
      %v321 = vunpack.c.l.b16 %v276
      %v322 = vunpack.c.h.b16 %v276
      %v323 = vunpack.c.l.b16 %v277
      %v324 = vunpack.c.h.b16 %v277
      %v325 = vunpack.c.l.b16 %v278
      %v326 = vunpack.c.h.b16 %v278
      %v327 = vunpack.c.l.b16 %v279
      %v328 = vunpack.c.h.b16 %v279
      %v329 = vunpack.c.l.b16 %v280
      %v330 = vunpack.c.h.b16 %v280
      %v331 = vunpack.c.l.b16 %v281
      %v332 = vunpack.c.h.b16 %v281
      %v333 = vunpack.c.l.b16 %v282
      %v334 = vunpack.c.h.b16 %v282
      %v335 = vunpack.c.l.b16 %v283
      %v336 = vunpack.c.h.b16 %v283
      %v337 = vunpack.c.l.b16 %v284
      %v338 = vunpack.c.h.b16 %v284
      %v339 = vunpack.c.l.b16 %v285
      %v340 = vunpack.c.h.b16 %v285
      %v341 = vunpack.c.l.b16 %v286
      %v342 = vunpack.c.h.b16 %v286
      %v343 = vunpack.c.l.b16 %v287
      %v344 = vunpack.c.h.b16 %v287
      %v345 = vunpack.c.l.b16 %v288
      %v346 = vunpack.c.h.b16 %v288
      %v347 = vunpack.c.l.b16 %v289
      %v348 = vunpack.c.h.b16 %v289
      %v349 = vpack.c.b16 %v319, %v317
      %v350 = vpack.c.b16 %v320, %v318
      %v351 = vpack.c.b16 %v323, %v321
      %v352 = vpack.c.b16 %v324, %v322
      %v353 = vpack.c.b16 %v327, %v325
      %v354 = vpack.c.b16 %v328, %v326
      %v355 = vpack.c.b16 %v331, %v329
      %v356 = vpack.c.b16 %v332, %v330
      %v357 = vpack.c.b16 %v335, %v333
      %v358 = vpack.c.b16 %v336, %v334
      %v359 = vpack.c.b16 %v339, %v337
      %v360 = vpack.c.b16 %v340, %v338
      %v361 = vpack.c.b16 %v343, %v341
      %v362 = vpack.c.b16 %v344, %v342
      %v363 = vpack.c.b16 %v347, %v345
      %v364 = vpack.c.b16 %v348, %v346
      %381 = vmatprep.subr.bf16.mxu0 %v364
      %382 = vmatpush1.bf16.msra.mxu0 %v363
      %383 = vmatprep.subr.bf16.mxu0 %v362
      %384 = vmatpush1.bf16.msra.mxu0 %v361
      %385 = vmatprep.subr.bf16.mxu0 %v360
      %386 = vmatpush1.bf16.msra.mxu0 %v359
      %387 = vmatprep.subr.bf16.mxu0 %v358
      %388 = vmatpush1.bf16.msra.mxu0 %v357
      %389 = vmatprep.subr.bf16.mxu0 %v356
      %390 = vmatpush1.bf16.msra.mxu0 %v355
      %391 = vmatprep.subr.bf16.mxu0 %v354
      %392 = vmatpush1.bf16.msra.mxu0 %v353
      %393 = vmatprep.subr.bf16.mxu0 %v352
      %394 = vmatpush1.bf16.msra.mxu0 %v351
      %395 = vmatprep.subr.bf16.mxu0 %v350
      %396 = vmatpush1.bf16.msra.mxu0 %v349
      %397 = vmatprep.subr.bf16.mxu0 0
      %398 = vmatpush2.bf16.msra.mxu0 0
      %399 = vmatprep.subr.bf16.mxu0 0
      %400 = vmatpush2.bf16.msra.mxu0 0
      %401 = vmatprep.subr.bf16.mxu0 0
      %402 = vmatpush2.bf16.msra.mxu0 0
      %403 = vmatprep.subr.bf16.mxu0 0
      %404 = vmatpush2.bf16.msra.mxu0 0
      %405 = vmatprep.subr.bf16.mxu0 0
      %406 = vmatpush2.bf16.msra.mxu0 0
      %407 = vmatprep.subr.bf16.mxu0 0
      %408 = vmatpush2.bf16.msra.mxu0 0
      %409 = vmatprep.subr.bf16.mxu0 0
      %410 = vmatpush2.bf16.msra.mxu0 0
      %411 = vmatprep.subr.bf16.mxu0 0
      %412 = vmatpush2.bf16.msra.mxu0 0
      %413 = vmatprep.mubr.bf16.mxu0 0
      %414 = vmatmul.mubr.bf16.gmra.mxu0 %v271
      %v415 = vpop.f32.mrf.mxu0
      %v416 = vadd.f32 %v294, %v415
      %v417 = vpop.f32.mrf.mxu0
      %v418 = vadd.f32 %v298, %v417
      %v419 = vpop.f32.mrf.mxu0
      %v420 = vpop.f32.mrf.mxu0
      %421 = vdwg.mxu0
      %v422 = vxor.u32 %v416, 2147483648
      %v423 = vmul.f32 %v422, 1.442695
      %v424 = vpow.pop %v423
      %v425 = vadd.f32 %v424, 1.0
      %v426 = vrcp.pop %v425
      %v427 = vmul.f32 1.0, %v426
      %v428 = vtanh.pop %v418
      %v429 = vxor.u32 %v418, 2147483648
      %v430 = vmul.f32 %v429, 1.442695
      %v431 = vpow.pop %v430
      %v432 = vadd.f32 %v431, 1.0
      %v433 = vrcp.pop %v432
      %v434 = vmul.f32 1.0, %v433
      %v435 = vmul.f32 %v427, %v264
      %v436 = vmul.f32 %v427, %v428
      %438 = vrot.lane.b32.xlu0 %v436, 64
      %v439 = vpop.permute.xlu0 %438
      %v441 = vadd.f32 %v435, %v439
      %v442 = vtanh.pop %v441
      %v443 = vmul.f32 %v434, %v442
      %445 = vrot.lane.b32.xlu0 %v443, 64
      %v446 = vpop.permute.xlu0 %445
      %v448 = vsel %vm269, %v446, %v441
      %449 = vst [vmem:[#allocation2] sm:$0xff] %v448
      %450 = vst [vmem:[%s236] sm:$0xff] %v448
      %v451 = vld [vmem:[%s2 + $0x5] ss:$0 sm:$0xff]
      %v452 = vld [vmem:[%s2 + $0x6] ss:$0 sm:$0xff]
      %v453 = vld [vmem:[%s2 + $0x4] ss:$0 sm:$0xff]
      %455 = vrot.lane.b32.xlu0 %v451, 64
      %v456 = vpop.permute.xlu0 %455
      %v458 = vmul.f32 %v443, %v456
      %460 = vrot.lane.b32.xlu0 %v458, 64
      %v461 = vpop.permute.xlu0 %460
      %v463 = vsel %vm269, %v461, 0.0
      %464 = vadd.xlane.f32.xlu0 %v463
      %v465 = vpop.xlane.xlu0 %464
      %467 = vrot.lane.b32.xlu0 %v452, 64
      %v468 = vpop.permute.xlu0 %467
      %v470 = vmul.f32 %v443, %v468
      %472 = vrot.lane.b32.xlu0 %v470, 64
      %v473 = vpop.permute.xlu0 %472
      %v475 = vsel %vm269, %v473, 0.0
      %476 = vadd.xlane.f32.xlu0 %v475
      %v477 = vpop.xlane.xlu0 %476
      %vm478 = vcmask 7168
      %v479 = vsel %vm478, %v465, %v477
      %v480 = vadd.f32 %v479, %v453
      %v481 = vtanh.pop %v480
      %vm482 = vcmask 15360
      %483 = vst.msk [vmem:[%s236 + $0x8] sm:$0xff] %vm482, %v481
      %p484 = scmp.lt.s32.totalorder %s19, 1
      %s485 = scalar_select %p484, %s19, 1
      %p486 = scmp.lt.s32.totalorder %s20, 7
      %s487 = scalar_select %p486, %s20, 7
      %s488 = smul.addr %s487, 2
      %s489 = smul.addr %s485, 16
      %s490 = sadd.s32 %s488, %s489
      %s491 = smul.addr %s490, 8
      %s492 = scalar_lea.vmem %s4, %s491
      // Predicated region
      $region41: #{vlstm_sequence.1} parent=35 // pred_check
        %p493 = pneg %p141
      $region42: #{vlstm_sequence.1} parent=35 // pred_check_branch
        %495 = sbr.rel (%p493) target = $region44
      $region43: #{vlstm_sequence.1} parent=35 // pred_region
        _
      $region44: #{vlstm_sequence.1} parent=35 // pred_fallthru
        _
    $region36: #{vlstm_sequence.1} parent=5 // pred_fallthru
      _
    %p496 = scmp.le.s32.totalorder 2, %s10
    // Predicated region
    $region45: #{vlstm_sequence.1} parent=5 // pred_check
      %p497 = pneg %p496
    $region46: #{vlstm_sequence.1} parent=5 // pred_check_branch
      %499 = sbr.rel (%p497) target = $region48
    $region47: #{vlstm_sequence.1} parent=5 // pred_region
      %s500 = ssub.s32 %s10, 2
      // Predicated region
      $region49: #{vlstm_sequence.1} parent=47 // pred_check
        %p501 = pneg %p147
      $region50: #{vlstm_sequence.1} parent=47 // pred_check_branch
        %503 = sbr.rel (%p501) target = $region52
      $region51: #{vlstm_sequence.1} parent=47 // pred_region
        %p504 = scmp.lt.s32.totalorder %s21, 1
        %s505 = scalar_select %p504, %s21, 1
        %p506 = scmp.lt.s32.totalorder %s22, 7
        %s507 = scalar_select %p506, %s22, 7
        %s508 = smul.addr %s507, 2
        %s509 = smul.addr %s505, 16
        %s510 = sadd.s32 %s508, %s509
        %s511 = smul.addr %s510, 8
        %s512 = scalar_lea.vmem %s4, %s511
      $region52: #{vlstm_sequence.1} parent=47 // pred_fallthru
        _
    $region48: #{vlstm_sequence.1} parent=5 // pred_fallthru
      _
  $region6: #{vlstm_sequence.1} parent=0 // loop_footer
    %s14 = sadd.s32 1, %s10
  $region7: #{vlstm_sequence.1} parent=0 // loop_footer_branch
    %9 = sbr.rel target = $region3
  $region8: #{vlstm_sequence.1} parent=0 // loop_exit
    _

</llo_original>
